<compile_context>
chip_gen: v6e
topology: v6e:2x2x1
jax: 0.10.0
libtpu: 0.0.40
codegen_flags: <defaults>
</compile_context>

<pallas_src>
import jax
import jax.numpy as jnp
from jax.experimental import pallas as pl
from jax.experimental.pallas import tpu as pltpu


def affine_kernel(params_ref, xt_ref, o_ref):
    # params_ref (SMEM, shape (3,)): [w0, w1, b] of the collapsed affine map.
    # xt_ref: (2, TILE) block -- batch rows live on the lane axis.
    # o_ref : (1, TILE) block -- lane-dense output.
    w0 = params_ref[0]
    w1 = params_ref[1]
    b = params_ref[2]
    # Pure VPU broadcast-FMAs; no MXU pass for a K=2 contraction.
    o_ref[...] = xt_ref[0:1, :] * w0 + xt_ref[1:2, :] * w1 + b


def mlp_forward(x, w1, b1, w2, b2, w3, b3, *, max_tile=8192):
    """Forward of layer_3(layer_2(layer_1(x))) for x of shape (N, 2).

    Weights are passed pre-transposed as (in, out); biases as (1, out),
    i.e. each layer is x @ W + b (same math as nn.Linear).
    """
    n = x.shape[0]

    # Algebraic collapse of the bias-chain (exact up to f32 reassociation).
    w_tot = w1 @ w2 @ w3                      # (2, 1)
    b_tot = b1 @ w2 @ w3 + b2 @ w3 + b3       # (1, 1)
    params = jnp.concatenate([w_tot[:, 0], b_tot[0]]).astype(jnp.float32)  # (3,)

    # Lane-dense layout: batch on the lane axis, padded to a multiple of the
    # tile (tile itself is a multiple of 128 and capped well under VMEM even
    # on v7x's 64 MiB).
    tile = min(max_tile, 128 * pl.cdiv(n, 128))
    n_pad = tile * pl.cdiv(n, tile)
    xt = jnp.zeros((2, n_pad), jnp.float32).at[:, :n].set(x.T.astype(jnp.float32))

    yt = pl.pallas_call(
        affine_kernel,
        out_shape=jax.ShapeDtypeStruct((1, n_pad), jnp.float32),
        grid=(n_pad // tile,),
        in_specs=[
            pl.BlockSpec(memory_space=pltpu.MemorySpace.SMEM),  # folded params
            pl.BlockSpec((2, tile), lambda i: (0, i)),          # x^T batch tile
        ],
        out_specs=pl.BlockSpec((1, tile), lambda i: (0, i)),
        compiler_params=pltpu.CompilerParams(
            dimension_semantics=("parallel",),  # shard batch tiles across TCs (v7x)
        ),
    )(params, xt)

    return yt[0, :n].reshape(n, 1)


def init_params(key):
    # Deterministic init mimicking nn.Linear's U(-1/sqrt(fan_in), 1/sqrt(fan_in)).
    dims = [(2, 10), (10, 10), (10, 1)]
    params = []
    for fan_in, fan_out in dims:
        kw, kb, key = jax.random.split(key, 3)
        bound = 1.0 / jnp.sqrt(fan_in)
        w = jax.random.uniform(kw, (fan_in, fan_out), jnp.float32, -bound, bound)
        b = jax.random.uniform(kb, (1, fan_out), jnp.float32, -bound, bound)
        params += [w, b]
    return params


if __name__ == "__main__":
    key = jax.random.PRNGKey(0)
    kx, kp = jax.random.split(key)
    batch = 8
    x = jax.random.normal(kx, (batch, 2), dtype=jnp.float32)
    w1, b1, w2, b2, w3, b3 = init_params(kp)

    out = mlp_forward(x, w1, b1, w2, b2, w3, b3)
    jax.block_until_ready(out)

    # Reference: the original three chained Linear layers in plain JAX.
    ref = ((x @ w1 + b1) @ w2 + b2) @ w3 + b3
    assert out.shape == (batch, 1)
    assert jnp.allclose(out, ref, atol=1e-5, rtol=1e-5)
    print("KERNEL_OK")
</pallas_src>

<mosaic_0001>
module attributes {stable_mosaic.version = 11 : i64} {
  func.func @affine_kernel(%arg0: i32, %arg1: memref<3xf32, #tpu.memory_space<smem>>, %arg2: memref<2x128xf32, #tpu.memory_space<vmem>>, %arg3: memref<1x128xf32, #tpu.memory_space<vmem>>) attributes {dimension_semantics = [#tpu.dimension_semantics<parallel>], iteration_bounds = array<i64: 1>, scalar_prefetch = 0 : i64, scratch_operands = 0 : i64, tpu.core_type = #tpu.core_type<tc>, window_params = [{transform_indices = @transform_0, window_bounds = array<i64: 3>}, {transform_indices = @transform_1, window_bounds = array<i64: 2, 128>}, {transform_indices = @transform_2, window_bounds = array<i64: 1, 128>}]} {
    %c0 = arith.constant 0 : index
    %0 = memref.load %arg1[%c0] : memref<3xf32, #tpu.memory_space<smem>>
    %c1 = arith.constant 1 : index
    %1 = memref.load %arg1[%c1] : memref<3xf32, #tpu.memory_space<smem>>
    %c2 = arith.constant 2 : index
    %2 = memref.load %arg1[%c2] : memref<3xf32, #tpu.memory_space<smem>>
    %c0_0 = arith.constant 0 : index
    %c0_1 = arith.constant 0 : index
    %3 = vector.load %arg2[%c0_0, %c0_1] : memref<2x128xf32, #tpu.memory_space<vmem>>, vector<1x128xf32>
    %4 = vector.broadcast %0 : f32 to vector<1x128xf32>
    %5 = arith.mulf %3, %4 : vector<1x128xf32>
    %c1_2 = arith.constant 1 : index
    %c0_3 = arith.constant 0 : index
    %6 = vector.load %arg2[%c1_2, %c0_3] : memref<2x128xf32, #tpu.memory_space<vmem>>, vector<1x128xf32>
    %7 = vector.broadcast %1 : f32 to vector<1x128xf32>
    %8 = arith.mulf %6, %7 : vector<1x128xf32>
    %9 = arith.addf %5, %8 : vector<1x128xf32>
    %10 = vector.broadcast %2 : f32 to vector<1x128xf32>
    %11 = arith.addf %9, %10 : vector<1x128xf32>
    %c0_4 = arith.constant 0 : index
    %c0_5 = arith.constant 0 : index
    %12 = vector.load %arg3[%c0_4, %c0_5] : memref<1x128xf32, #tpu.memory_space<vmem>>, vector<1x128xf32>
    tpu.vector_store %arg3[%c0_4, %c0_5], %11 {strides = array<i32>} : memref<1x128xf32, #tpu.memory_space<vmem>>, vector<1x128xf32>,
    return
  }
  func.func @transform_0(%arg0: i32) -> i32 {
    %c0_i32 = arith.constant 0 : i32
    %c0_i32_0 = arith.constant 0 : i32
    return %c0_i32 : i32
  }
  func.func @transform_1(%arg0: i32) -> (i32, i32) {
    %c0_i32 = arith.constant 0 : i32
    %c0_i32_0 = arith.constant 0 : i32
    return %c0_i32, %arg0 : i32, i32
  }
  func.func @transform_2(%arg0: i32) -> (i32, i32) {
    %c0_i32 = arith.constant 0 : i32
    %c0_i32_0 = arith.constant 0 : i32
    return %c0_i32, %arg0 : i32, i32
  }
}

</mosaic_0001>

<llo_original>
// kernel: tpu_custom_call.1
$region0: #{tpu_custom_call.1}
  #allocation0 [shape = 'u32[]', space=smem, size = 0x4, offset = 0x4, fixed_abs, tag = 'smem constant byte address 0x4 - core index']
  #allocation1 [shape = 'u32[144,128]{1,0:T(1,128)}', space=vmem, size = 0x12000, scoped, tag = 'internal scratch']
  %s0 = inlined_call_operand.hbm [shape: f32[3], index: 0, kind: input, shape index: {}]
  %s1 = inlined_call_operand.hbm [shape: f32[2,128], index: 1, kind: input, shape index: {}]
  %s2 = inlined_call_operand.hbm [shape: f32[1,128], index: 2, kind: output, shape index: {}]
  %s3 = sld [smem:[#allocation0]]
  $region26: #{tpu_custom_call.1} parent=0
    _
  %s5 = ssub.s32 1, %s3
  %s6 = scalar_select 0, %s5, %s3
  $region1: #{tpu_custom_call.1} parent=0
    #allocation2 [shape = 'u8[512]{0}', space=smem, size = 0x200, scoped, tag = 'input window, operand 0, single buffered']
    #allocation3 [shape = 's32[1]{0}', space=sflag, size = 0x4, scoped, tag = 'scoped memory for tpu_custom_call.1']
    #allocation4 [shape = 's32[1]{0}', space=sflag, size = 0x4, scoped, tag = 'scoped memory for tpu_custom_call.1']
    #allocation5 [shape = 's32[1]{0}', space=sflag, size = 0x4, scoped, tag = 'scoped memory for tpu_custom_call.1']
    #allocation6 [shape = 'u8[1024]{0}', space=vmem, size = 0x400, scoped, tag = 'input window, operand 1, single buffered']
    #allocation7 [shape = 'u8[512]{0}', space=vmem, size = 0x400, scoped, tag = 'output window, operand 0, single buffered']
    %7 = vsyncpa [#allocation5], 0
    %8 = vsyncpa [#allocation3], 0
    %9 = vsyncpa [#allocation4], 0
    // Predicated region
    $region2: #{tpu_custom_call.1} parent=1 // pred_check
      _
    $region3: #{tpu_custom_call.1} parent=1 // pred_check_branch
      %11 = sbr.rel (0) target = $region5
    $region4: #{tpu_custom_call.1} parent=1 // pred_region
      %s13 = ssub.s32 16, 16
      %14 = vsyncadd [#allocation5], %s13
      %17 = dma.hbm_to_smem %s0, 16, [#allocation2], [#allocation5]
    $region5: #{tpu_custom_call.1} parent=1 // pred_fallthru
      _
    // Predicated region
    $region6: #{tpu_custom_call.1} parent=1 // pred_check
      _
    $region7: #{tpu_custom_call.1} parent=1 // pred_check_branch
      %19 = sbr.rel (0) target = $region9
    $region8: #{tpu_custom_call.1} parent=1 // pred_region
      %s21 = ssub.s32 32, 32
      %22 = vsyncadd [#allocation3], %s21
      %s24 = sshll.u32 [#allocation6], 4
      %s25 = int_to_ptr.vmem [resolvable:$true] %s24
      %27 = dma.hbm_to_vmem [thread:$0]  %s1, 32, %s25, [#allocation3]
    $region9: #{tpu_custom_call.1} parent=1 // pred_fallthru
      _
    // Predicated region
    $region10: #{tpu_custom_call.1} parent=1 // pred_check
      _
    $region11: #{tpu_custom_call.1} parent=1 // pred_check_branch
      %29 = sbr.rel (0) target = $region13
    $region12: #{tpu_custom_call.1} parent=1 // pred_region
      %30 = dma.done [#allocation5], 16
    $region13: #{tpu_custom_call.1} parent=1 // pred_fallthru
      _
    // Predicated region
    $region14: #{tpu_custom_call.1} parent=1 // pred_check
      _
    $region15: #{tpu_custom_call.1} parent=1 // pred_check_branch
      %32 = sbr.rel (0) target = $region17
    $region16: #{tpu_custom_call.1} parent=1 // pred_region
      %33 = dma.done [#allocation3], 32
    $region17: #{tpu_custom_call.1} parent=1 // pred_fallthru
      _
    %34 = sfence
    %s35 = sld [smem:[#allocation2]]
    %s36 = sld [smem:[#allocation2 + $0x1]]
    %s37 = sld [smem:[#allocation2 + $0x2]]
    %v38 = vld [vmem:[#allocation6] sm:$0x1]
    %v39 = vstv %s35
    %v40 = vmul.f32 %v38, %v39
    %v41 = vld [vmem:[#allocation6 + $0x1] sm:$0x1]
    %v42 = vstv %s36
    %v43 = vmul.f32 %v41, %v42
    %v44 = vadd.f32 %v40, %v43
    %v45 = vstv %s37
    %v46 = vadd.f32 %v44, %v45
    %47 = vst [vmem:[#allocation7] sm:$0x1] %v46
    // Predicated region
    $region18: #{tpu_custom_call.1} parent=1 // pred_check
      _
    $region19: #{tpu_custom_call.1} parent=1 // pred_check_branch
      %49 = sbr.rel (0) target = $region21
    $region20: #{tpu_custom_call.1} parent=1 // pred_region
      %s51 = ssub.s32 16, 16
      %52 = vsyncadd [#allocation4], %s51
      %s54 = sshll.u32 [#allocation7], 4
      %s55 = int_to_ptr.vmem [resolvable:$true] %s54
      %57 = dma.vmem_to_hbm [thread:$0]  %s55, 16, %s2, [#allocation4]
    $region21: #{tpu_custom_call.1} parent=1 // pred_fallthru
      _
    // Predicated region
    $region22: #{tpu_custom_call.1} parent=1 // pred_check
      _
    $region23: #{tpu_custom_call.1} parent=1 // pred_check_branch
      %59 = sbr.rel (0) target = $region25
    $region24: #{tpu_custom_call.1} parent=1 // pred_region
      %60 = dma.done [#allocation4], 16
    $region25: #{tpu_custom_call.1} parent=1 // pred_fallthru
      _
    %61 = vsyncpa [#allocation3], 1
    %62 = vsyncpa [#allocation4], 1
    %63 = vsyncpa [#allocation5], 1

</llo_original>
